<compile_context>
chip_gen: v7x
topology: tpu7x:2x2x1
jax: 0.10.0
libtpu: 0.0.40
codegen_flags: <defaults>
</compile_context>

<pallas_src>
import functools

import jax
import jax.numpy as jnp
from jax.experimental import pallas as pl
from jax.experimental.pallas import tpu as pltpu

LN_EPS = 1e-5          # PyTorch nn.LayerNorm default
LEAKY_SLOPE = 0.2      # nn.LeakyReLU(0.2)
H1, H2, H3 = 512, 128, 32   # hidden widths of the Generator MLP


def _round_up(x, m):
    return ((x + m - 1) // m) * m


def _ln_act(x, gamma, beta, n_real, out_dtype):
    """One-pass LayerNorm fused with LeakyReLU(0.2) and the output cast.

    Stats use the E[x^2] - E[x]^2 form over the first `n_real` features.
    When the feature axis is zero-padded past `n_real`, the padded entries of
    x are exactly 0 (zero weight cols + zero bias), so plain sums over the
    padded axis equal sums over the real features.  gamma/beta are zero on
    padded lanes, so padded outputs stay exactly 0.
    """
    inv_n = 1.0 / float(n_real)
    mean = jnp.sum(x, axis=-1, keepdims=True) * inv_n
    ex2 = jnp.sum(x * x, axis=-1, keepdims=True) * inv_n
    var = jnp.maximum(ex2 - mean * mean, 0.0)
    # All-zero padding rows hit rsqrt(LN_EPS): finite and sliced off later.
    inv = jax.lax.rsqrt(var + LN_EPS)
    y = (x - mean) * inv * gamma + beta
    y = jnp.where(y > 0, y, LEAKY_SLOPE * y)
    return y.astype(out_dtype)


def generator_kernel(
    z_ref,
    w1_ref, b1_ref, g1_ref, be1_ref,
    w2_ref, b2_ref, g2_ref, be2_ref,
    w3_ref, b3_ref, g3_ref, be3_ref,
    w4_ref, b4_ref,
    out_ref,
    *, ln3_n, mxu_dtype,
):
    # Cast to the MXU input dtype in-kernel (hidden under the input DMA).
    x = z_ref[...].astype(mxu_dtype)                       # (block_b, Z)

    # Block 1: Linear(Z, 512) -> LayerNorm(512) -> LeakyReLU(0.2)
    h = jnp.dot(x, w1_ref[...], preferred_element_type=jnp.float32) + b1_ref[...]
    h = _ln_act(h, g1_ref[...], be1_ref[...], H1, mxu_dtype)

    # Block 2: Linear(512, 128) -> LayerNorm(128) -> LeakyReLU(0.2)
    h = jnp.dot(h, w2_ref[...], preferred_element_type=jnp.float32) + b2_ref[...]
    h = _ln_act(h, g2_ref[...], be2_ref[...], H2, mxu_dtype)

    # Block 3: Linear(128, 32) -> LayerNorm(32) -> LeakyReLU(0.2)
    # (feature dim zero-padded 32 -> 128; LN stats use the real 32 features)
    h = jnp.dot(h, w3_ref[...], preferred_element_type=jnp.float32) + b3_ref[...]
    h = _ln_act(h, g3_ref[...], be3_ref[...], ln3_n, mxu_dtype)

    # Output head: Linear(32, Z)  (rows zero-padded 32 -> 128)
    y = jnp.dot(h, w4_ref[...], preferred_element_type=jnp.float32) + b4_ref[...]
    out_ref[...] = y.astype(out_ref.dtype)


def _pad2d(a, rows, cols, dtype=None):
    dtype = a.dtype if dtype is None else dtype
    out = jnp.zeros((rows, cols), dtype)
    return out.at[: a.shape[0], : a.shape[1]].set(a.astype(dtype))


def generator_forward(z, params, *, block_b=1024, mxu_dtype=jnp.bfloat16):
    """Run the Generator forward pass with a single fused Pallas kernel."""
    B, Z = z.shape
    (w1, b1, g1, be1, w2, b2, g2, be2, w3, b3, g3, be3, w4, b4) = params

    H3p = _round_up(H3, 128)   # 32 -> 128 lane-dense hidden for block 3 / head

    # Batch tile: big enough to amortize the ~0.35us per-step overhead, never
    # larger than the (sublane-rounded) batch, and halved until the grid has
    # >= 2 steps when the batch allows it so the "parallel" axis can shard
    # across both v7x TensorCores (v5e/v6e single-TC unaffected).
    bb = max(16, min(_round_up(block_b, 16), _round_up(B, 16)))
    while bb >= 32 and pl.cdiv(B, bb) < 2:
        bb = _round_up(bb // 2, 16)
    Bp = _round_up(B, bb)

    # Only pad the (tiny / unaligned) batch tail on the host; no lane padding
    # or dtype cast of z outside the kernel.
    zin = z if Bp == B else jnp.zeros((Bp, Z), z.dtype).at[:B].set(z)

    # bf16 MXU inputs everywhere (f32 accumulation in-kernel).  The 32-wide
    # hidden is zero-padded to 128 lanes with zero weight cols/rows and zero
    # bias/gamma/beta pads, so the padded math is exact.
    w1c = w1.astype(mxu_dtype)
    w2c = w2.astype(mxu_dtype)
    w3p = _pad2d(w3, H2, H3p, mxu_dtype)
    b3p = _pad2d(b3, 1, H3p)
    g3p = _pad2d(g3, 1, H3p)
    be3p = _pad2d(be3, 1, H3p)
    w4p = _pad2d(w4, H3p, Z, mxu_dtype)

    kernel_params = (w1c, b1, g1, be1, w2c, b2, g2, be2,
                     w3p, b3p, g3p, be3p, w4p, b4)

    def full_spec(arr):
        # Whole (small) parameter array as one VMEM-resident block; constant
        # index_map => no re-DMA / re-buffering across grid revisits.
        return pl.BlockSpec(arr.shape, lambda i: (0, 0))

    in_specs = [pl.BlockSpec((bb, Z), lambda i: (i, 0))]
    in_specs += [full_spec(p) for p in kernel_params]

    flops = 2 * Bp * (Z * H1 + H1 * H2 + H2 * H3p + H3p * Z)
    bytes_accessed = (
        int(zin.size) * zin.dtype.itemsize
        + Bp * Z * z.dtype.itemsize
        + sum(int(p.size) * p.dtype.itemsize for p in kernel_params)
    )

    out = pl.pallas_call(
        functools.partial(generator_kernel, ln3_n=H3, mxu_dtype=mxu_dtype),
        out_shape=jax.ShapeDtypeStruct((Bp, Z), z.dtype),
        grid_spec=pltpu.PrefetchScalarGridSpec(
            num_scalar_prefetch=0,
            grid=(Bp // bb,),
            in_specs=in_specs,
            out_specs=pl.BlockSpec((bb, Z), lambda i: (i, 0)),
        ),
        compiler_params=pltpu.CompilerParams(
            dimension_semantics=("parallel",),
        ),
        cost_estimate=pl.CostEstimate(
            flops=flops,
            transcendentals=3 * Bp,
            bytes_accessed=bytes_accessed,
        ),
    )(zin, *kernel_params)

    return out if Bp == B else out[:B]


def init_params(key, z_size):
    """Deterministic synthetic parameters (shapes match the nn.Module)."""
    dims = [(z_size, H1), (H1, H2), (H2, H3), (H3, z_size)]
    params = []
    for li, (din, dout) in enumerate(dims):
        kw, kb = jax.random.split(jax.random.fold_in(key, li))
        scale = 1.0 / jnp.sqrt(jnp.float32(din))
        w = jax.random.uniform(kw, (din, dout), jnp.float32, -scale, scale)
        b = jax.random.uniform(kb, (1, dout), jnp.float32, -scale, scale)
        params += [w, b]
        if li < 3:  # LayerNorm affine params after the first three linears
            gamma = jnp.ones((1, dout), jnp.float32)
            beta = jnp.zeros((1, dout), jnp.float32)
            params += [gamma, beta]
    return tuple(params)


def _layernorm_ref(x, gamma, beta):
    mean = jnp.mean(x, axis=-1, keepdims=True)
    xc = x - mean
    var = jnp.mean(xc * xc, axis=-1, keepdims=True)
    return xc * jax.lax.rsqrt(var + LN_EPS) * gamma + beta


def _leaky_ref(x):
    return jnp.where(x > 0, x, LEAKY_SLOPE * x)


def reference_forward(z, params, mxu_dtype=jnp.bfloat16):
    """Pure-JAX reference with the same bf16-input / f32-accumulate matmuls."""
    (w1, b1, g1, be1, w2, b2, g2, be2, w3, b3, g3, be3, w4, b4) = params

    def mm(x, w, b):
        return jnp.dot(x.astype(mxu_dtype), w.astype(mxu_dtype),
                       preferred_element_type=jnp.float32) + b

    h = _leaky_ref(_layernorm_ref(mm(z, w1, b1), g1, be1))
    h = _leaky_ref(_layernorm_ref(mm(h, w2, b2), g2, be2))
    h = _leaky_ref(_layernorm_ref(mm(h, w3, b3), g3, be3))
    return mm(h, w4, b4)


if __name__ == "__main__":
    z_size = 64
    batch = 8

    key = jax.random.PRNGKey(0)
    kz, kp = jax.random.split(key)
    z = jax.random.normal(kz, (batch, z_size), jnp.float32)
    params = init_params(kp, z_size)

    out = generator_forward(z, params)
    out = jax.block_until_ready(out)

    ref = reference_forward(z, params)
    assert out.shape == (batch, z_size)
    assert jnp.allclose(out, ref, atol=5e-3, rtol=5e-3), "mismatch vs reference"

    print("KERNEL_OK")
</pallas_src>

<mosaic_0001>
module attributes {stable_mosaic.version = 11 : i64} {
  func.func @generator_kernel(%arg0: i32, %arg1: memref<16x64xf32, #tpu.memory_space<vmem>>, %arg2: memref<64x512xbf16, #tpu.memory_space<vmem>>, %arg3: memref<1x512xf32, #tpu.memory_space<vmem>>, %arg4: memref<1x512xf32, #tpu.memory_space<vmem>>, %arg5: memref<1x512xf32, #tpu.memory_space<vmem>>, %arg6: memref<512x128xbf16, #tpu.memory_space<vmem>>, %arg7: memref<1x128xf32, #tpu.memory_space<vmem>>, %arg8: memref<1x128xf32, #tpu.memory_space<vmem>>, %arg9: memref<1x128xf32, #tpu.memory_space<vmem>>, %arg10: memref<128x128xbf16, #tpu.memory_space<vmem>>, %arg11: memref<1x128xf32, #tpu.memory_space<vmem>>, %arg12: memref<1x128xf32, #tpu.memory_space<vmem>>, %arg13: memref<1x128xf32, #tpu.memory_space<vmem>>, %arg14: memref<128x64xbf16, #tpu.memory_space<vmem>>, %arg15: memref<1x64xf32, #tpu.memory_space<vmem>>, %arg16: memref<16x64xf32, #tpu.memory_space<vmem>>) attributes {dimension_semantics = [#tpu.dimension_semantics<parallel>], iteration_bounds = array<i64: 1>, scalar_prefetch = 0 : i64, scratch_operands = 0 : i64, tpu.core_type = #tpu.core_type<tc>, window_params = [{transform_indices = @transform_0, window_bounds = array<i64: 16, 64>}, {pipeline_mode = #tpu.pipeline_mode<synchronous>, transform_indices = @transform_1, window_bounds = array<i64: 64, 512>}, {pipeline_mode = #tpu.pipeline_mode<synchronous>, transform_indices = @transform_2, window_bounds = array<i64: 1, 512>}, {pipeline_mode = #tpu.pipeline_mode<synchronous>, transform_indices = @transform_3, window_bounds = array<i64: 1, 512>}, {pipeline_mode = #tpu.pipeline_mode<synchronous>, transform_indices = @transform_4, window_bounds = array<i64: 1, 512>}, {pipeline_mode = #tpu.pipeline_mode<synchronous>, transform_indices = @transform_5, window_bounds = array<i64: 512, 128>}, {pipeline_mode = #tpu.pipeline_mode<synchronous>, transform_indices = @transform_6, window_bounds = array<i64: 1, 128>}, {pipeline_mode = #tpu.pipeline_mode<synchronous>, transform_indices = @transform_7, window_bounds = array<i64: 1, 128>}, {pipeline_mode = #tpu.pipeline_mode<synchronous>, transform_indices = @transform_8, window_bounds = array<i64: 1, 128>}, {pipeline_mode = #tpu.pipeline_mode<synchronous>, transform_indices = @transform_9, window_bounds = array<i64: 128, 128>}, {pipeline_mode = #tpu.pipeline_mode<synchronous>, transform_indices = @transform_10, window_bounds = array<i64: 1, 128>}, {pipeline_mode = #tpu.pipeline_mode<synchronous>, transform_indices = @transform_11, window_bounds = array<i64: 1, 128>}, {pipeline_mode = #tpu.pipeline_mode<synchronous>, transform_indices = @transform_12, window_bounds = array<i64: 1, 128>}, {pipeline_mode = #tpu.pipeline_mode<synchronous>, transform_indices = @transform_13, window_bounds = array<i64: 128, 64>}, {pipeline_mode = #tpu.pipeline_mode<synchronous>, transform_indices = @transform_14, window_bounds = array<i64: 1, 64>}, {transform_indices = @transform_15, window_bounds = array<i64: 16, 64>}]} {
    %c0 = arith.constant 0 : index
    %c0_0 = arith.constant 0 : index
    %0 = vector.load %arg1[%c0, %c0_0] : memref<16x64xf32, #tpu.memory_space<vmem>>, vector<16x64xf32>
    %1 = arith.truncf %0 : vector<16x64xf32> to vector<16x64xbf16>
    %c0_1 = arith.constant 0 : index
    %c0_2 = arith.constant 0 : index
    %2 = vector.load %arg2[%c0_1, %c0_2] : memref<64x512xbf16, #tpu.memory_space<vmem>>, vector<64x512xbf16>
    %cst = arith.constant dense<0.000000e+00> : vector<16x512xf32>
    %3 = tpu.matmul %1, %2, %cst {dimension_numbers = #tpu.dot_dimension_numbers<[1], [0], [0], [1], [0, 0, 1, 1], [], []>} : vector<16x64xbf16>, vector<64x512xbf16>, vector<16x512xf32> -> vector<16x512xf32>
    %c0_3 = arith.constant 0 : index
    %c0_4 = arith.constant 0 : index
    %4 = vector.load %arg3[%c0_3, %c0_4] : memref<1x512xf32, #tpu.memory_space<vmem>>, vector<1x512xf32>
    %5 = vector.broadcast %4 : vector<1x512xf32> to vector<16x512xf32>
    %6 = arith.addf %3, %5 : vector<16x512xf32>
    %c0_5 = arith.constant 0 : index
    %c0_6 = arith.constant 0 : index
    %7 = vector.load %arg4[%c0_5, %c0_6] : memref<1x512xf32, #tpu.memory_space<vmem>>, vector<1x512xf32>
    %c0_7 = arith.constant 0 : index
    %c0_8 = arith.constant 0 : index
    %8 = vector.load %arg5[%c0_7, %c0_8] : memref<1x512xf32, #tpu.memory_space<vmem>>, vector<1x512xf32>
    %cst_9 = arith.constant dense<0.000000e+00> : vector<16xf32>
    %9 = vector.multi_reduction <add>, %6, %cst_9 [1] : vector<16x512xf32> to vector<16xf32>
    %10 = vector.shape_cast %9 : vector<16xf32> to vector<16x1xf32>
    %cst_10 = arith.constant 0.001953125 : f32
    %11 = vector.broadcast %cst_10 : f32 to vector<16x1xf32>
    %12 = arith.mulf %10, %11 : vector<16x1xf32>
    %13 = arith.mulf %6, %6 : vector<16x512xf32>
    %cst_11 = arith.constant dense<0.000000e+00> : vector<16xf32>
    %14 = vector.multi_reduction <add>, %13, %cst_11 [1] : vector<16x512xf32> to vector<16xf32>
    %15 = vector.shape_cast %14 : vector<16xf32> to vector<16x1xf32>
    %cst_12 = arith.constant 0.001953125 : f32
    %16 = vector.broadcast %cst_12 : f32 to vector<16x1xf32>
    %17 = arith.mulf %15, %16 : vector<16x1xf32>
    %18 = arith.mulf %12, %12 : vector<16x1xf32>
    %19 = arith.subf %17, %18 : vector<16x1xf32>
    %cst_13 = arith.constant 0.000000e+00 : f32
    %20 = vector.broadcast %cst_13 : f32 to vector<16x1xf32>
    %21 = arith.maximumf %19, %20 : vector<16x1xf32>
    %cst_14 = arith.constant 9.99999974E-6 : f32
    %22 = vector.broadcast %cst_14 : f32 to vector<16x1xf32>
    %23 = arith.addf %21, %22 : vector<16x1xf32>
    %24 = math.rsqrt %23 : vector<16x1xf32>
    %25 = vector.broadcast %12 : vector<16x1xf32> to vector<16x512xf32>
    %26 = arith.subf %6, %25 : vector<16x512xf32>
    %27 = vector.broadcast %24 : vector<16x1xf32> to vector<16x512xf32>
    %28 = arith.mulf %26, %27 : vector<16x512xf32>
    %29 = vector.broadcast %7 : vector<1x512xf32> to vector<16x512xf32>
    %30 = arith.mulf %28, %29 : vector<16x512xf32>
    %31 = vector.broadcast %8 : vector<1x512xf32> to vector<16x512xf32>
    %32 = arith.addf %30, %31 : vector<16x512xf32>
    %cst_15 = arith.constant 0.000000e+00 : f32
    %33 = vector.broadcast %cst_15 : f32 to vector<16x512xf32>
    %34 = arith.cmpf ogt, %32, %33 : vector<16x512xf32>
    %cst_16 = arith.constant 2.000000e-01 : f32
    %35 = vector.broadcast %cst_16 : f32 to vector<16x512xf32>
    %36 = arith.mulf %35, %32 : vector<16x512xf32>
    %37 = arith.select %34, %32, %36 : vector<16x512xi1>, vector<16x512xf32>
    %38 = arith.truncf %37 : vector<16x512xf32> to vector<16x512xbf16>
    %c0_17 = arith.constant 0 : index
    %c0_18 = arith.constant 0 : index
    %39 = vector.load %arg6[%c0_17, %c0_18] : memref<512x128xbf16, #tpu.memory_space<vmem>>, vector<512x128xbf16>
    %cst_19 = arith.constant dense<0.000000e+00> : vector<16x128xf32>
    %40 = tpu.matmul %38, %39, %cst_19 {dimension_numbers = #tpu.dot_dimension_numbers<[1], [0], [0], [1], [0, 0, 1, 1], [], []>} : vector<16x512xbf16>, vector<512x128xbf16>, vector<16x128xf32> -> vector<16x128xf32>
    %c0_20 = arith.constant 0 : index
    %c0_21 = arith.constant 0 : index
    %41 = vector.load %arg7[%c0_20, %c0_21] : memref<1x128xf32, #tpu.memory_space<vmem>>, vector<1x128xf32>
    %42 = vector.broadcast %41 : vector<1x128xf32> to vector<16x128xf32>
    %43 = arith.addf %40, %42 : vector<16x128xf32>
    %c0_22 = arith.constant 0 : index
    %c0_23 = arith.constant 0 : index
    %44 = vector.load %arg8[%c0_22, %c0_23] : memref<1x128xf32, #tpu.memory_space<vmem>>, vector<1x128xf32>
    %c0_24 = arith.constant 0 : index
    %c0_25 = arith.constant 0 : index
    %45 = vector.load %arg9[%c0_24, %c0_25] : memref<1x128xf32, #tpu.memory_space<vmem>>, vector<1x128xf32>
    %cst_26 = arith.constant dense<0.000000e+00> : vector<16xf32>
    %46 = vector.multi_reduction <add>, %43, %cst_26 [1] : vector<16x128xf32> to vector<16xf32>
    %47 = vector.shape_cast %46 : vector<16xf32> to vector<16x1xf32>
    %cst_27 = arith.constant 7.812500e-03 : f32
    %48 = vector.broadcast %cst_27 : f32 to vector<16x1xf32>
    %49 = arith.mulf %47, %48 : vector<16x1xf32>
    %50 = arith.mulf %43, %43 : vector<16x128xf32>
    %cst_28 = arith.constant dense<0.000000e+00> : vector<16xf32>
    %51 = vector.multi_reduction <add>, %50, %cst_28 [1] : vector<16x128xf32> to vector<16xf32>
    %52 = vector.shape_cast %51 : vector<16xf32> to vector<16x1xf32>
    %cst_29 = arith.constant 7.812500e-03 : f32
    %53 = vector.broadcast %cst_29 : f32 to vector<16x1xf32>
    %54 = arith.mulf %52, %53 : vector<16x1xf32>
    %55 = arith.mulf %49, %49 : vector<16x1xf32>
    %56 = arith.subf %54, %55 : vector<16x1xf32>
    %cst_30 = arith.constant 0.000000e+00 : f32
    %57 = vector.broadcast %cst_30 : f32 to vector<16x1xf32>
    %58 = arith.maximumf %56, %57 : vector<16x1xf32>
    %cst_31 = arith.constant 9.99999974E-6 : f32
    %59 = vector.broadcast %cst_31 : f32 to vector<16x1xf32>
    %60 = arith.addf %58, %59 : vector<16x1xf32>
    %61 = math.rsqrt %60 : vector<16x1xf32>
    %62 = vector.broadcast %49 : vector<16x1xf32> to vector<16x128xf32>
    %63 = arith.subf %43, %62 : vector<16x128xf32>
    %64 = vector.broadcast %61 : vector<16x1xf32> to vector<16x128xf32>
    %65 = arith.mulf %63, %64 : vector<16x128xf32>
    %66 = vector.broadcast %44 : vector<1x128xf32> to vector<16x128xf32>
    %67 = arith.mulf %65, %66 : vector<16x128xf32>
    %68 = vector.broadcast %45 : vector<1x128xf32> to vector<16x128xf32>
    %69 = arith.addf %67, %68 : vector<16x128xf32>
    %cst_32 = arith.constant 0.000000e+00 : f32
    %70 = vector.broadcast %cst_32 : f32 to vector<16x128xf32>
    %71 = arith.cmpf ogt, %69, %70 : vector<16x128xf32>
    %cst_33 = arith.constant 2.000000e-01 : f32
    %72 = vector.broadcast %cst_33 : f32 to vector<16x128xf32>
    %73 = arith.mulf %72, %69 : vector<16x128xf32>
    %74 = arith.select %71, %69, %73 : vector<16x128xi1>, vector<16x128xf32>
    %75 = arith.truncf %74 : vector<16x128xf32> to vector<16x128xbf16>
    %c0_34 = arith.constant 0 : index
    %c0_35 = arith.constant 0 : index
    %76 = vector.load %arg10[%c0_34, %c0_35] : memref<128x128xbf16, #tpu.memory_space<vmem>>, vector<128x128xbf16>
    %cst_36 = arith.constant dense<0.000000e+00> : vector<16x128xf32>
    %77 = tpu.matmul %75, %76, %cst_36 {dimension_numbers = #tpu.dot_dimension_numbers<[1], [0], [0], [1], [0, 0, 1, 1], [], []>} : vector<16x128xbf16>, vector<128x128xbf16>, vector<16x128xf32> -> vector<16x128xf32>
    %c0_37 = arith.constant 0 : index
    %c0_38 = arith.constant 0 : index
    %78 = vector.load %arg11[%c0_37, %c0_38] : memref<1x128xf32, #tpu.memory_space<vmem>>, vector<1x128xf32>
    %79 = vector.broadcast %78 : vector<1x128xf32> to vector<16x128xf32>
    %80 = arith.addf %77, %79 : vector<16x128xf32>
    %c0_39 = arith.constant 0 : index
    %c0_40 = arith.constant 0 : index
    %81 = vector.load %arg12[%c0_39, %c0_40] : memref<1x128xf32, #tpu.memory_space<vmem>>, vector<1x128xf32>
    %c0_41 = arith.constant 0 : index
    %c0_42 = arith.constant 0 : index
    %82 = vector.load %arg13[%c0_41, %c0_42] : memref<1x128xf32, #tpu.memory_space<vmem>>, vector<1x128xf32>
    %cst_43 = arith.constant dense<0.000000e+00> : vector<16xf32>
    %83 = vector.multi_reduction <add>, %80, %cst_43 [1] : vector<16x128xf32> to vector<16xf32>
    %84 = vector.shape_cast %83 : vector<16xf32> to vector<16x1xf32>
    %cst_44 = arith.constant 3.125000e-02 : f32
    %85 = vector.broadcast %cst_44 : f32 to vector<16x1xf32>
    %86 = arith.mulf %84, %85 : vector<16x1xf32>
    %87 = arith.mulf %80, %80 : vector<16x128xf32>
    %cst_45 = arith.constant dense<0.000000e+00> : vector<16xf32>
    %88 = vector.multi_reduction <add>, %87, %cst_45 [1] : vector<16x128xf32> to vector<16xf32>
    %89 = vector.shape_cast %88 : vector<16xf32> to vector<16x1xf32>
    %cst_46 = arith.constant 3.125000e-02 : f32
    %90 = vector.broadcast %cst_46 : f32 to vector<16x1xf32>
    %91 = arith.mulf %89, %90 : vector<16x1xf32>
    %92 = arith.mulf %86, %86 : vector<16x1xf32>
    %93 = arith.subf %91, %92 : vector<16x1xf32>
    %cst_47 = arith.constant 0.000000e+00 : f32
    %94 = vector.broadcast %cst_47 : f32 to vector<16x1xf32>
    %95 = arith.maximumf %93, %94 : vector<16x1xf32>
    %cst_48 = arith.constant 9.99999974E-6 : f32
    %96 = vector.broadcast %cst_48 : f32 to vector<16x1xf32>
    %97 = arith.addf %95, %96 : vector<16x1xf32>
    %98 = math.rsqrt %97 : vector<16x1xf32>
    %99 = vector.broadcast %86 : vector<16x1xf32> to vector<16x128xf32>
    %100 = arith.subf %80, %99 : vector<16x128xf32>
    %101 = vector.broadcast %98 : vector<16x1xf32> to vector<16x128xf32>
    %102 = arith.mulf %100, %101 : vector<16x128xf32>
    %103 = vector.broadcast %81 : vector<1x128xf32> to vector<16x128xf32>
    %104 = arith.mulf %102, %103 : vector<16x128xf32>
    %105 = vector.broadcast %82 : vector<1x128xf32> to vector<16x128xf32>
    %106 = arith.addf %104, %105 : vector<16x128xf32>
    %cst_49 = arith.constant 0.000000e+00 : f32
    %107 = vector.broadcast %cst_49 : f32 to vector<16x128xf32>
    %108 = arith.cmpf ogt, %106, %107 : vector<16x128xf32>
    %cst_50 = arith.constant 2.000000e-01 : f32
    %109 = vector.broadcast %cst_50 : f32 to vector<16x128xf32>
    %110 = arith.mulf %109, %106 : vector<16x128xf32>
    %111 = arith.select %108, %106, %110 : vector<16x128xi1>, vector<16x128xf32>
    %112 = arith.truncf %111 : vector<16x128xf32> to vector<16x128xbf16>
    %c0_51 = arith.constant 0 : index
    %c0_52 = arith.constant 0 : index
    %113 = vector.load %arg14[%c0_51, %c0_52] : memref<128x64xbf16, #tpu.memory_space<vmem>>, vector<128x64xbf16>
    %cst_53 = arith.constant dense<0.000000e+00> : vector<16x64xf32>
    %114 = tpu.matmul %112, %113, %cst_53 {dimension_numbers = #tpu.dot_dimension_numbers<[1], [0], [0], [1], [0, 0, 1, 1], [], []>} : vector<16x128xbf16>, vector<128x64xbf16>, vector<16x64xf32> -> vector<16x64xf32>
    %c0_54 = arith.constant 0 : index
    %c0_55 = arith.constant 0 : index
    %115 = vector.load %arg15[%c0_54, %c0_55] : memref<1x64xf32, #tpu.memory_space<vmem>>, vector<1x64xf32>
    %116 = vector.broadcast %115 : vector<1x64xf32> to vector<16x64xf32>
    %117 = arith.addf %114, %116 : vector<16x64xf32>
    %c0_56 = arith.constant 0 : index
    %c0_57 = arith.constant 0 : index
    %118 = vector.load %arg16[%c0_56, %c0_57] : memref<16x64xf32, #tpu.memory_space<vmem>>, vector<16x64xf32>
    tpu.vector_store %arg16[%c0_56, %c0_57], %117 {strides = array<i32>} : memref<16x64xf32, #tpu.memory_space<vmem>>, vector<16x64xf32>,
    return
  }
  func.func @transform_0(%arg0: i32) -> (i32, i32) {
    %c0_i32 = arith.constant 0 : i32
    %c0_i32_0 = arith.constant 0 : i32
    return %arg0, %c0_i32 : i32, i32
  }
  func.func @transform_1(%arg0: i32) -> (i32, i32) {
    %c0_i32 = arith.constant 0 : i32
    %c0_i32_0 = arith.constant 0 : i32
    %c0_i32_1 = arith.constant 0 : i32
    return %c0_i32, %c0_i32_0 : i32, i32
  }
  func.func @transform_2(%arg0: i32) -> (i32, i32) {
    %c0_i32 = arith.constant 0 : i32
    %c0_i32_0 = arith.constant 0 : i32
    %c0_i32_1 = arith.constant 0 : i32
    return %c0_i32, %c0_i32_0 : i32, i32
  }
  func.func @transform_3(%arg0: i32) -> (i32, i32) {
    %c0_i32 = arith.constant 0 : i32
    %c0_i32_0 = arith.constant 0 : i32
    %c0_i32_1 = arith.constant 0 : i32
    return %c0_i32, %c0_i32_0 : i32, i32
  }
  func.func @transform_4(%arg0: i32) -> (i32, i32) {
    %c0_i32 = arith.constant 0 : i32
    %c0_i32_0 = arith.constant 0 : i32
    %c0_i32_1 = arith.constant 0 : i32
    return %c0_i32, %c0_i32_0 : i32, i32
  }
  func.func @transform_5(%arg0: i32) -> (i32, i32) {
    %c0_i32 = arith.constant 0 : i32
    %c0_i32_0 = arith.constant 0 : i32
    %c0_i32_1 = arith.constant 0 : i32
    return %c0_i32, %c0_i32_0 : i32, i32
  }
  func.func @transform_6(%arg0: i32) -> (i32, i32) {
    %c0_i32 = arith.constant 0 : i32
    %c0_i32_0 = arith.constant 0 : i32
    %c0_i32_1 = arith.constant 0 : i32
    return %c0_i32, %c0_i32_0 : i32, i32
  }
  func.func @transform_7(%arg0: i32) -> (i32, i32) {
    %c0_i32 = arith.constant 0 : i32
    %c0_i32_0 = arith.constant 0 : i32
    %c0_i32_1 = arith.constant 0 : i32
    return %c0_i32, %c0_i32_0 : i32, i32
  }
  func.func @transform_8(%arg0: i32) -> (i32, i32) {
    %c0_i32 = arith.constant 0 : i32
    %c0_i32_0 = arith.constant 0 : i32
    %c0_i32_1 = arith.constant 0 : i32
    return %c0_i32, %c0_i32_0 : i32, i32
  }
  func.func @transform_9(%arg0: i32) -> (i32, i32) {
    %c0_i32 = arith.constant 0 : i32
    %c0_i32_0 = arith.constant 0 : i32
    %c0_i32_1 = arith.constant 0 : i32
    return %c0_i32, %c0_i32_0 : i32, i32
  }
  func.func @transform_10(%arg0: i32) -> (i32, i32) {
    %c0_i32 = arith.constant 0 : i32
    %c0_i32_0 = arith.constant 0 : i32
    %c0_i32_1 = arith.constant 0 : i32
    return %c0_i32, %c0_i32_0 : i32, i32
  }
  func.func @transform_11(%arg0: i32) -> (i32, i32) {
    %c0_i32 = arith.constant 0 : i32
    %c0_i32_0 = arith.constant 0 : i32
    %c0_i32_1 = arith.constant 0 : i32
    return %c0_i32, %c0_i32_0 : i32, i32
  }
  func.func @transform_12(%arg0: i32) -> (i32, i32) {
    %c0_i32 = arith.constant 0 : i32
    %c0_i32_0 = arith.constant 0 : i32
    %c0_i32_1 = arith.constant 0 : i32
    return %c0_i32, %c0_i32_0 : i32, i32
  }
  func.func @transform_13(%arg0: i32) -> (i32, i32) {
    %c0_i32 = arith.constant 0 : i32
    %c0_i32_0 = arith.constant 0 : i32
    %c0_i32_1 = arith.constant 0 : i32
    return %c0_i32, %c0_i32_0 : i32, i32
  }
  func.func @transform_14(%arg0: i32) -> (i32, i32) {
    %c0_i32 = arith.constant 0 : i32
    %c0_i32_0 = arith.constant 0 : i32
    %c0_i32_1 = arith.constant 0 : i32
    return %c0_i32, %c0_i32_0 : i32, i32
  }
  func.func @transform_15(%arg0: i32) -> (i32, i32) {
    %c0_i32 = arith.constant 0 : i32
    %c0_i32_0 = arith.constant 0 : i32
    return %arg0, %c0_i32 : i32, i32
  }
}

</mosaic_0001>

<llo_original>
// kernel: tpu_custom_call.1
$region0: #{tpu_custom_call.1}
  #allocation0 [shape = 'u32[]', space=smem, size = 0x4, offset = 0x4, fixed_abs, tag = 'smem constant byte address 0x4 - core index']
  #allocation1 [shape = 'u32[144,128]{1,0:T(1,128)}', space=vmem, size = 0x12000, scoped, tag = 'internal scratch']
  %s0 = inlined_call_operand.vmem [shape: f32[16,64], index: 0, kind: input, shape index: {}]
  %s1 = inlined_call_operand.hbm [shape: bf16[64,512], index: 1, kind: input, shape index: {}]
  %s2 = inlined_call_operand.vmem [shape: f32[1,512], index: 2, kind: input, shape index: {}]
  %s3 = inlined_call_operand.vmem [shape: f32[1,512], index: 3, kind: input, shape index: {}]
  %s4 = inlined_call_operand.vmem [shape: f32[1,512], index: 4, kind: input, shape index: {}]
  %s5 = inlined_call_operand.hbm [shape: bf16[512,128], index: 5, kind: input, shape index: {}]
  %s6 = inlined_call_operand.vmem [shape: f32[1,128], index: 6, kind: input, shape index: {}]
  %s7 = inlined_call_operand.vmem [shape: f32[1,128], index: 7, kind: input, shape index: {}]
  %s8 = inlined_call_operand.vmem [shape: f32[1,128], index: 8, kind: input, shape index: {}]
  %s9 = inlined_call_operand.vmem [shape: bf16[128,128], index: 9, kind: input, shape index: {}]
  %s10 = inlined_call_operand.vmem [shape: f32[1,128], index: 10, kind: input, shape index: {}]
  %s11 = inlined_call_operand.vmem [shape: f32[1,128], index: 11, kind: input, shape index: {}]
  %s12 = inlined_call_operand.vmem [shape: f32[1,128], index: 12, kind: input, shape index: {}]
  %s13 = inlined_call_operand.vmem [shape: bf16[128,64], index: 13, kind: input, shape index: {}]
  %s14 = inlined_call_operand.vmem [shape: f32[1,64], index: 14, kind: input, shape index: {}]
  %s15 = inlined_call_operand.hbm [shape: f32[16,64], index: 15, kind: output, shape index: {}]
  %s16 = sld [smem:[#allocation0]]
  $region78: #{tpu_custom_call.1} parent=0
    _
  %s18 = ssub.s32 1, %s16
  %s19 = scalar_select 0, %s18, %s16
  $region1: #{tpu_custom_call.1} parent=0
    #allocation2 [shape = 'u8[65536]{0}', space=vmem, size = 0x10000, scoped, tag = 'input window, operand 1, single buffered']
    #allocation3 [shape = 's32[1]{0}', space=sflag, size = 0x4, scoped, tag = 'scoped memory for tpu_custom_call.1']
    #allocation4 [shape = 's32[1]{0}', space=sflag, size = 0x4, scoped, tag = 'scoped memory for tpu_custom_call.1']
    #allocation5 [shape = 'u8[131072]{0}', space=vmem, size = 0x20000, scoped, tag = 'input window, operand 5, single buffered']
    #allocation6 [shape = 's32[1]{0}', space=sflag, size = 0x4, scoped, tag = 'scoped memory for tpu_custom_call.1']
    #allocation7 [shape = 'u8[8192]{0}', space=vmem, size = 0x2000, scoped, tag = 'output window, operand 0, single buffered']
    %20 = vsyncpa [#allocation3], 0
    %21 = vsyncpa [#allocation6], 0
    %22 = vsyncpa [#allocation4], 0
    // Predicated region
    $region2: #{tpu_custom_call.1} parent=1 // pred_check
      _
    $region3: #{tpu_custom_call.1} parent=1 // pred_check_branch
      %24 = sbr.rel (0) target = $region5
    $region4: #{tpu_custom_call.1} parent=1 // pred_region
      _
    $region5: #{tpu_custom_call.1} parent=1 // pred_fallthru
      _
    // Predicated region
    $region6: #{tpu_custom_call.1} parent=1 // pred_check
      _
    $region7: #{tpu_custom_call.1} parent=1 // pred_check_branch
      %26 = sbr.rel (0) target = $region9
    $region8: #{tpu_custom_call.1} parent=1 // pred_region
      %s28 = ssub.s32 2048, 2048
      %29 = vsyncadd [#allocation3], %s28
      %s30 = sshll.u32 [#allocation2], 4
      %s31 = int_to_ptr.vmem [resolvable:$true] %s30
      %36 = dma.hbm_to_vmem [thread:$0]  %s1, 2048, %s31, [#allocation3], 256, 256, 16
    $region9: #{tpu_custom_call.1} parent=1 // pred_fallthru
      _
    // Predicated region
    $region10: #{tpu_custom_call.1} parent=1 // pred_check
      _
    $region11: #{tpu_custom_call.1} parent=1 // pred_check_branch
      %38 = sbr.rel (0) target = $region13
    $region12: #{tpu_custom_call.1} parent=1 // pred_region
      _
    $region13: #{tpu_custom_call.1} parent=1 // pred_fallthru
      _
    // Predicated region
    $region14: #{tpu_custom_call.1} parent=1 // pred_check
      _
    $region15: #{tpu_custom_call.1} parent=1 // pred_check_branch
      %40 = sbr.rel (0) target = $region17
    $region16: #{tpu_custom_call.1} parent=1 // pred_region
      _
    $region17: #{tpu_custom_call.1} parent=1 // pred_fallthru
      _
    // Predicated region
    $region18: #{tpu_custom_call.1} parent=1 // pred_check
      _
    $region19: #{tpu_custom_call.1} parent=1 // pred_check_branch
      %42 = sbr.rel (0) target = $region21
    $region20: #{tpu_custom_call.1} parent=1 // pred_region
      _
    $region21: #{tpu_custom_call.1} parent=1 // pred_fallthru
      _
    // Predicated region
    $region22: #{tpu_custom_call.1} parent=1 // pred_check
      _
    $region23: #{tpu_custom_call.1} parent=1 // pred_check_branch
      %44 = sbr.rel (0) target = $region25
    $region24: #{tpu_custom_call.1} parent=1 // pred_region
      %s46 = ssub.s32 4096, 4096
      %47 = vsyncadd [#allocation6], %s46
      %s48 = sshll.u32 [#allocation5], 4
      %s49 = int_to_ptr.vmem [resolvable:$true] %s48
      %54 = dma.hbm_to_vmem [thread:$0]  %s5, 4096, %s49, [#allocation6], 64, 64, 4
    $region25: #{tpu_custom_call.1} parent=1 // pred_fallthru
      _
    // Predicated region
    $region26: #{tpu_custom_call.1} parent=1 // pred_check
      _
    $region27: #{tpu_custom_call.1} parent=1 // pred_check_branch
      %56 = sbr.rel (0) target = $region29
    $region28: #{tpu_custom_call.1} parent=1 // pred_region
      _
    $region29: #{tpu_custom_call.1} parent=1 // pred_fallthru
      _
    // Predicated region
    $region30: #{tpu_custom_call.1} parent=1 // pred_check
      _
    $region31: #{tpu_custom_call.1} parent=1 // pred_check_branch
      %58 = sbr.rel (0) target = $region33
    $region32: #{tpu_custom_call.1} parent=1 // pred_region
      _
    $region33: #{tpu_custom_call.1} parent=1 // pred_fallthru
      _
    // Predicated region
    $region34: #{tpu_custom_call.1} parent=1 // pred_check
      _
    $region35: #{tpu_custom_call.1} parent=1 // pred_check_branch
      %60 = sbr.rel (0) target = $region37
    $region36: #{tpu_custom_call.1} parent=1 // pred_region
      _
    $region37: #{tpu_custom_call.1} parent=1 // pred_fallthru
      _
    // Predicated region
    $region38: #{tpu_custom_call.1} parent=1 // pred_check
      _
    $region39: #{tpu_custom_call.1} parent=1 // pred_check_branch
      %62 = sbr.rel (0) target = $region41
    $region40: #{tpu_custom_call.1} parent=1 // pred_region
      _
    $region41: #{tpu_custom_call.1} parent=1 // pred_fallthru
      _
    // Predicated region
    $region42: #{tpu_custom_call.1} parent=1 // pred_check
      _
    $region43: #{tpu_custom_call.1} parent=1 // pred_check_branch
      %64 = sbr.rel (0) target = $region45
    $region44: #{tpu_custom_call.1} parent=1 // pred_region
      _
    $region45: #{tpu_custom_call.1} parent=1 // pred_fallthru
      _
    // Predicated region
    $region46: #{tpu_custom_call.1} parent=1 // pred_check
      _
    $region47: #{tpu_custom_call.1} parent=1 // pred_check_branch
      %66 = sbr.rel (0) target = $region49
    $region48: #{tpu_custom_call.1} parent=1 // pred_region
      _
    $region49: #{tpu_custom_call.1} parent=1 // pred_fallthru
      _
    // Predicated region
    $region50: #{tpu_custom_call.1} parent=1 // pred_check
      _
    $region51: #{tpu_custom_call.1} parent=1 // pred_check_branch
      %68 = sbr.rel (0) target = $region53
    $region52: #{tpu_custom_call.1} parent=1 // pred_region
      _
    $region53: #{tpu_custom_call.1} parent=1 // pred_fallthru
      _
    // Predicated region
    $region54: #{tpu_custom_call.1} parent=1 // pred_check
      _
    $region55: #{tpu_custom_call.1} parent=1 // pred_check_branch
      %70 = sbr.rel (0) target = $region57
    $region56: #{tpu_custom_call.1} parent=1 // pred_region
      _
    $region57: #{tpu_custom_call.1} parent=1 // pred_fallthru
      _
    // Predicated region
    $region58: #{tpu_custom_call.1} parent=1 // pred_check
      _
    $region59: #{tpu_custom_call.1} parent=1 // pred_check_branch
      %72 = sbr.rel (0) target = $region61
    $region60: #{tpu_custom_call.1} parent=1 // pred_region
      _
    $region61: #{tpu_custom_call.1} parent=1 // pred_fallthru
      _
    // Predicated region
    $region62: #{tpu_custom_call.1} parent=1 // pred_check
      _
    $region63: #{tpu_custom_call.1} parent=1 // pred_check_branch
      %74 = sbr.rel (0) target = $region65
    $region64: #{tpu_custom_call.1} parent=1 // pred_region
      %75 = dma.done [#allocation3], 2048
    $region65: #{tpu_custom_call.1} parent=1 // pred_fallthru
      _
    // Predicated region
    $region66: #{tpu_custom_call.1} parent=1 // pred_check
      _
    $region67: #{tpu_custom_call.1} parent=1 // pred_check_branch
      %77 = sbr.rel (0) target = $region69
    $region68: #{tpu_custom_call.1} parent=1 // pred_region
      %78 = dma.done [#allocation6], 4096
    $region69: #{tpu_custom_call.1} parent=1 // pred_fallthru
      _
    %v80 = vld [vmem:[%s0] sm:$0xff]
    %v81 = vld [vmem:[%s0 + $0x8] sm:$0xff]
    %v82 = vpack.c.bf16 %v81, %v80
    %v83 = vld [vmem:[#allocation2] sm:$0xff]
    %v84 = vld [vmem:[#allocation2 + $0x8] sm:$0xff]
    %v85 = vld [vmem:[#allocation2 + $0x10] sm:$0xff]
    %v86 = vld [vmem:[#allocation2 + $0x18] sm:$0xff]
    %v87 = vld [vmem:[#allocation2 + $0x20] sm:$0xff]
    %v88 = vld [vmem:[#allocation2 + $0x28] sm:$0xff]
    %v89 = vld [vmem:[#allocation2 + $0x30] sm:$0xff]
    %v90 = vld [vmem:[#allocation2 + $0x38] sm:$0xff]
    %v91 = vld [vmem:[#allocation2 + $0x40] sm:$0xff]
    %v92 = vld [vmem:[#allocation2 + $0x48] sm:$0xff]
    %v93 = vld [vmem:[#allocation2 + $0x50] sm:$0xff]
    %v94 = vld [vmem:[#allocation2 + $0x58] sm:$0xff]
    %v95 = vld [vmem:[#allocation2 + $0x60] sm:$0xff]
    %v96 = vld [vmem:[#allocation2 + $0x68] sm:$0xff]
    %v97 = vld [vmem:[#allocation2 + $0x70] sm:$0xff]
    %v98 = vld [vmem:[#allocation2 + $0x78] sm:$0xff]
    %v99 = vld [vmem:[%s2] sm:$0xf]
    %v101 = vlaneseq
    %v102 = vshrl.u32 %v101, 7
    %v103 = vsub.s32 0, %v102
    %v104 = vrot.slane %v99, %v103
    %v105 = vlaneseq
    %v106 = vshrl.u32 %v105, 7
    %v107 = vsub.s32 1, %v106
    %v108 = vrot.slane %v99, %v107
    %v109 = vlaneseq
    %v110 = vshrl.u32 %v109, 7
    %v111 = vsub.s32 2, %v110
    %v112 = vrot.slane %v99, %v111
    %v113 = vlaneseq
    %v114 = vshrl.u32 %v113, 7
    %v115 = vsub.s32 3, %v114
    %v116 = vrot.slane %v99, %v115
    %v137 = vunpack.c.l.b16 %v83
    %v138 = vunpack.c.h.b16 %v83
    %v139 = vunpack.c.l.b16 %v84
    %v140 = vunpack.c.h.b16 %v84
    %v141 = vunpack.c.l.b16 %v85
    %v142 = vunpack.c.h.b16 %v85
    %v143 = vunpack.c.l.b16 %v86
    %v144 = vunpack.c.h.b16 %v86
    %v145 = vunpack.c.l.b16 %v87
    %v146 = vunpack.c.h.b16 %v87
    %v147 = vunpack.c.l.b16 %v88
    %v148 = vunpack.c.h.b16 %v88
    %v149 = vunpack.c.l.b16 %v89
    %v150 = vunpack.c.h.b16 %v89
    %v151 = vunpack.c.l.b16 %v90
    %v152 = vunpack.c.h.b16 %v90
    %v153 = vunpack.c.l.b16 %v91
    %v154 = vunpack.c.h.b16 %v91
    %v155 = vunpack.c.l.b16 %v92
    %v156 = vunpack.c.h.b16 %v92
    %v157 = vunpack.c.l.b16 %v93
    %v158 = vunpack.c.h.b16 %v93
    %v159 = vunpack.c.l.b16 %v94
    %v160 = vunpack.c.h.b16 %v94
    %v161 = vunpack.c.l.b16 %v95
    %v162 = vunpack.c.h.b16 %v95
    %v163 = vunpack.c.l.b16 %v96
    %v164 = vunpack.c.h.b16 %v96
    %v165 = vunpack.c.l.b16 %v97
    %v166 = vunpack.c.h.b16 %v97
    %v167 = vunpack.c.l.b16 %v98
    %v168 = vunpack.c.h.b16 %v98
    %v169 = vpack.c.b16 %v141, %v137
    %v170 = vpack.c.b16 %v142, %v138
    %v171 = vpack.c.b16 %v143, %v139
    %v172 = vpack.c.b16 %v144, %v140
    %v173 = vpack.c.b16 %v149, %v145
    %v174 = vpack.c.b16 %v150, %v146
    %v175 = vpack.c.b16 %v151, %v147
    %v176 = vpack.c.b16 %v152, %v148
    %v177 = vpack.c.b16 %v157, %v153
    %v178 = vpack.c.b16 %v158, %v154
    %v179 = vpack.c.b16 %v159, %v155
    %v180 = vpack.c.b16 %v160, %v156
    %v181 = vpack.c.b16 %v165, %v161
    %v182 = vpack.c.b16 %v166, %v162
    %v183 = vpack.c.b16 %v167, %v163
    %v184 = vpack.c.b16 %v168, %v164
    %vm201 = vcmask 523264
    %v203 = vsel %vm201, %v82, 0
    %205 = vmatprep.subr.bf16.mxu0 %v170
    %206 = vmatpush1.bf16.msra.mxu0 %v169
    %207 = vmatprep.subr.bf16.mxu0 %v174
    %208 = vmatpush1.bf16.msra.mxu0 %v173
    %209 = vmatprep.subr.bf16.mxu0 %v178
    %210 = vmatpush1.bf16.msra.mxu0 %v177
    %211 = vmatprep.subr.bf16.mxu0 %v182
    %212 = vmatpush1.bf16.msra.mxu0 %v181
    %213 = vmatprep.subr.bf16.mxu0 0
    %214 = vmatpush1.bf16.msra.mxu0 0
    %215 = vmatprep.subr.bf16.mxu0 0
    %216 = vmatpush1.bf16.msra.mxu0 0
    %217 = vmatprep.subr.bf16.mxu0 0
    %218 = vmatpush1.bf16.msra.mxu0 0
    %219 = vmatprep.subr.bf16.mxu0 0
    %220 = vmatpush1.bf16.msra.mxu0 0
    %221 = vmatprep.subr.bf16.mxu0 0
    %222 = vmatpush1.bf16.msra.mxu0 0
    %223 = vmatprep.subr.bf16.mxu0 0
    %224 = vmatpush1.bf16.msra.mxu0 0
    %225 = vmatprep.subr.bf16.mxu0 0
    %226 = vmatpush1.bf16.msra.mxu0 0
    %227 = vmatprep.subr.bf16.mxu0 0
    %228 = vmatpush1.bf16.msra.mxu0 0
    %229 = vmatprep.subr.bf16.mxu0 0
    %230 = vmatpush1.bf16.msra.mxu0 0
    %231 = vmatprep.subr.bf16.mxu0 0
    %232 = vmatpush1.bf16.msra.mxu0 0
    %233 = vmatprep.subr.bf16.mxu0 0
    %234 = vmatpush1.bf16.msra.mxu0 0
    %235 = vmatprep.subr.bf16.mxu0 0
    %236 = vmatpush1.bf16.msra.mxu0 0
    %237 = vmatprep.mubr.bf16.mxu0 0
    %238 = vmatmul.mubr.bf16.gmra.mrb[0].mxu0 %v203
    %v239 = vpop.f32.mrb[0].mxu0
    %v240 = vadd.f32 %v104, %v239
    %v241 = vpop.f32.mrb[0].mxu0
    %v242 = vadd.f32 %v108, %v241
    %v243 = vpop.f32.mrb[0].mxu0
    %v244 = vadd.f32 %v104, %v243
    %v245 = vpop.f32.mrb[0].mxu0
    %v246 = vadd.f32 %v108, %v245
    %247 = vdwg.mxu0
    %248 = vmatprep.subr.bf16.mxu0 %v172
    %249 = vmatpush1.bf16.msra.mxu0 %v171
    %250 = vmatprep.subr.bf16.mxu0 %v176
    %251 = vmatpush1.bf16.msra.mxu0 %v175
    %252 = vmatprep.subr.bf16.mxu0 %v180
    %253 = vmatpush1.bf16.msra.mxu0 %v179
    %254 = vmatprep.subr.bf16.mxu0 %v184
    %255 = vmatpush1.bf16.msra.mxu0 %v183
    %256 = vmatprep.subr.bf16.mxu0 0
    %257 = vmatpush1.bf16.msra.mxu0 0
    %258 = vmatprep.subr.bf16.mxu0 0
    %259 = vmatpush1.bf16.msra.mxu0 0
    %260 = vmatprep.subr.bf16.mxu0 0
    %261 = vmatpush1.bf16.msra.mxu0 0
    %262 = vmatprep.subr.bf16.mxu0 0
    %263 = vmatpush1.bf16.msra.mxu0 0
    %264 = vmatprep.subr.bf16.mxu0 0
    %265 = vmatpush1.bf16.msra.mxu0 0
    %266 = vmatprep.subr.bf16.mxu0 0
    %267 = vmatpush1.bf16.msra.mxu0 0
    %268 = vmatprep.subr.bf16.mxu0 0
    %269 = vmatpush1.bf16.msra.mxu0 0
    %270 = vmatprep.subr.bf16.mxu0 0
    %271 = vmatpush1.bf16.msra.mxu0 0
    %272 = vmatprep.subr.bf16.mxu0 0
    %273 = vmatpush1.bf16.msra.mxu0 0
    %274 = vmatprep.subr.bf16.mxu0 0
    %275 = vmatpush1.bf16.msra.mxu0 0
    %276 = vmatprep.subr.bf16.mxu0 0
    %277 = vmatpush1.bf16.msra.mxu0 0
    %278 = vmatprep.subr.bf16.mxu0 0
    %279 = vmatpush1.bf16.msra.mxu0 0
    %280 = vmatprep.mubr.bf16.mxu0 0
    %281 = vmatmul.mubr.bf16.gmra.mrb[0].mxu0 %v203
    %v282 = vpop.f32.mrb[0].mxu0
    %v283 = vadd.f32 %v112, %v282
    %v284 = vpop.f32.mrb[0].mxu0
    %v285 = vadd.f32 %v116, %v284
    %v286 = vpop.f32.mrb[0].mxu0
    %v287 = vadd.f32 %v112, %v286
    %v288 = vpop.f32.mrb[0].mxu0
    %v289 = vadd.f32 %v116, %v288
    %290 = vdwg.mxu0
    %v291 = vld [vmem:[%s3] sm:$0xf]
    %v292 = vld [vmem:[%s4] sm:$0xf]
    %v293 = vadd.f32 %v240, %v242
    %v294 = vadd.f32 %v293, %v283
    %v295 = vadd.f32 %v294, %v285
    %296 = vadd.xlane.f32.xlu0 %v295
    %v297 = vpop.xlane.xlu0 %296
    %v298 = vadd.f32 %v244, %v246
    %v299 = vadd.f32 %v298, %v287
    %v300 = vadd.f32 %v299, %v289
    %301 = vadd.xlane.f32.xlu0 %v300
    %v302 = vpop.xlane.xlu0 %301
    %v303 = vmul.f32 %v297, 0.001953125
    %v304 = vmul.f32 %v302, 0.001953125
    %v305 = vmul.f32 %v240, %v240
    %v306 = vmul.f32 %v242, %v242
    %v307 = vmul.f32 %v283, %v283
    %v308 = vmul.f32 %v285, %v285
    %v309 = vmul.f32 %v244, %v244
    %v310 = vmul.f32 %v246, %v246
    %v311 = vmul.f32 %v287, %v287
    %v312 = vmul.f32 %v289, %v289
    %v313 = vadd.f32 %v305, %v306
    %v314 = vadd.f32 %v313, %v307
    %v315 = vadd.f32 %v314, %v308
    %316 = vadd.xlane.f32.xlu0 %v315
    %v317 = vpop.xlane.xlu0 %316
    %v318 = vadd.f32 %v309, %v310
    %v319 = vadd.f32 %v318, %v311
    %v320 = vadd.f32 %v319, %v312
    %321 = vadd.xlane.f32.xlu0 %v320
    %v322 = vpop.xlane.xlu0 %321
    %v323 = vmul.f32 %v317, 0.001953125
    %v324 = vmul.f32 %v322, 0.001953125
    %v325 = vmul.f32 %v303, %v303
    %v326 = vmul.f32 %v304, %v304
    %v327 = vsub.f32 %v323, %v325
    %v328 = vsub.f32 %v324, %v326
    %v329 = vmax.f32 %v327, 0.0
    %v330 = vmax.f32 %v328, 0.0
    %v331 = vadd.f32 %v329, 1e-05
    %v332 = vadd.f32 %v330, 1e-05
    %v333 = vrsqrt.pop %v331
    %v334 = vrsqrt.pop %v332
    %v335 = vsub.f32 %v240, %v303
    %v336 = vsub.f32 %v242, %v303
    %v337 = vsub.f32 %v283, %v303
    %v338 = vsub.f32 %v285, %v303
    %v339 = vsub.f32 %v244, %v304
    %v340 = vsub.f32 %v246, %v304
    %v341 = vsub.f32 %v287, %v304
    %v342 = vsub.f32 %v289, %v304
    %v343 = vmul.f32 %v335, %v333
    %v344 = vmul.f32 %v336, %v333
    %v345 = vmul.f32 %v337, %v333
    %v346 = vmul.f32 %v338, %v333
    %v347 = vmul.f32 %v339, %v334
    %v348 = vmul.f32 %v340, %v334
    %v349 = vmul.f32 %v341, %v334
    %v350 = vmul.f32 %v342, %v334
    %v352 = vlaneseq
    %v353 = vshrl.u32 %v352, 7
    %v354 = vsub.s32 0, %v353
    %v355 = vrot.slane %v291, %v354
    %v356 = vlaneseq
    %v357 = vshrl.u32 %v356, 7
    %v358 = vsub.s32 1, %v357
    %v359 = vrot.slane %v291, %v358
    %v360 = vlaneseq
    %v361 = vshrl.u32 %v360, 7
    %v362 = vsub.s32 2, %v361
    %v363 = vrot.slane %v291, %v362
    %v364 = vlaneseq
    %v365 = vshrl.u32 %v364, 7
    %v366 = vsub.s32 3, %v365
    %v367 = vrot.slane %v291, %v366
    %v372 = vmul.f32 %v343, %v355
    %v373 = vmul.f32 %v344, %v359
    %v374 = vmul.f32 %v345, %v363
    %v375 = vmul.f32 %v346, %v367
    %v376 = vmul.f32 %v347, %v355
    %v377 = vmul.f32 %v348, %v359
    %v378 = vmul.f32 %v349, %v363
    %v379 = vmul.f32 %v350, %v367
    %v381 = vlaneseq
    %v382 = vshrl.u32 %v381, 7
    %v383 = vsub.s32 0, %v382
    %v384 = vrot.slane %v292, %v383
    %v385 = vlaneseq
    %v386 = vshrl.u32 %v385, 7
    %v387 = vsub.s32 1, %v386
    %v388 = vrot.slane %v292, %v387
    %v389 = vlaneseq
    %v390 = vshrl.u32 %v389, 7
    %v391 = vsub.s32 2, %v390
    %v392 = vrot.slane %v292, %v391
    %v393 = vlaneseq
    %v394 = vshrl.u32 %v393, 7
    %v395 = vsub.s32 3, %v394
    %v396 = vrot.slane %v292, %v395
    %v401 = vadd.f32 %v372, %v384
    %v402 = vadd.f32 %v373, %v388
    %v403 = vadd.f32 %v374, %v392
    %v404 = vadd.f32 %v375, %v396
    %v405 = vadd.f32 %v376, %v384
    %v406 = vadd.f32 %v377, %v388
    %v407 = vadd.f32 %v378, %v392
    %v408 = vadd.f32 %v379, %v396
    %vm409 = vcmp.gt.f32.partialorder %v401, 0.0
    %vm410 = vcmp.gt.f32.partialorder %v402, 0.0
    %vm411 = vcmp.gt.f32.partialorder %v403, 0.0
    %vm412 = vcmp.gt.f32.partialorder %v404, 0.0
    %vm413 = vcmp.gt.f32.partialorder %v405, 0.0
    %vm414 = vcmp.gt.f32.partialorder %v406, 0.0
    %vm415 = vcmp.gt.f32.partialorder %v407, 0.0
    %vm416 = vcmp.gt.f32.partialorder %v408, 0.0
    %v417 = vmul.f32 %v401, 0.2
    %v418 = vmul.f32 %v402, 0.2
    %v419 = vmul.f32 %v403, 0.2
    %v420 = vmul.f32 %v404, 0.2
    %v421 = vmul.f32 %v405, 0.2
    %v422 = vmul.f32 %v406, 0.2
    %v423 = vmul.f32 %v407, 0.2
    %v424 = vmul.f32 %v408, 0.2
    %v425 = vsel %vm409, %v401, %v417
    %v426 = vsel %vm410, %v402, %v418
    %v427 = vsel %vm411, %v403, %v419
    %v428 = vsel %vm412, %v404, %v420
    %v429 = vsel %vm413, %v405, %v421
    %v430 = vsel %vm414, %v406, %v422
    %v431 = vsel %vm415, %v407, %v423
    %v432 = vsel %vm416, %v408, %v424
    %v433 = vpack.c.bf16 %v429, %v425
    %v434 = vpack.c.bf16 %v430, %v426
    %v435 = vpack.c.bf16 %v431, %v427
    %v436 = vpack.c.bf16 %v432, %v428
    %v437 = vld [vmem:[#allocation5] sm:$0xf]
    %v438 = vld [vmem:[#allocation5 + $0x4] sm:$0xf]
    %v439 = vld [vmem:[#allocation5 + $0x8] sm:$0xf]
    %v440 = vld [vmem:[#allocation5 + $0xc] sm:$0xf]
    %v441 = vld [vmem:[#allocation5 + $0x10] sm:$0xf]
    %v442 = vld [vmem:[#allocation5 + $0x14] sm:$0xf]
    %v443 = vld [vmem:[#allocation5 + $0x18] sm:$0xf]
    %v444 = vld [vmem:[#allocation5 + $0x1c] sm:$0xf]
    %v445 = vld [vmem:[#allocation5 + $0x20] sm:$0xf]
    %v446 = vld [vmem:[#allocation5 + $0x24] sm:$0xf]
    %v447 = vld [vmem:[#allocation5 + $0x28] sm:$0xf]
    %v448 = vld [vmem:[#allocation5 + $0x2c] sm:$0xf]
    %v449 = vld [vmem:[#allocation5 + $0x30] sm:$0xf]
    %v450 = vld [vmem:[#allocation5 + $0x34] sm:$0xf]
    %v451 = vld [vmem:[#allocation5 + $0x38] sm:$0xf]
    %v452 = vld [vmem:[#allocation5 + $0x3c] sm:$0xf]
    %v453 = vld [vmem:[#allocation5 + $0x40] sm:$0xf]
    %v454 = vld [vmem:[#allocation5 + $0x44] sm:$0xf]
    %v455 = vld [vmem:[#allocation5 + $0x48] sm:$0xf]
    %v456 = vld [vmem:[#allocation5 + $0x4c] sm:$0xf]
    %v457 = vld [vmem:[#allocation5 + $0x50] sm:$0xf]
    %v458 = vld [vmem:[#allocation5 + $0x54] sm:$0xf]
    %v459 = vld [vmem:[#allocation5 + $0x58] sm:$0xf]
    %v460 = vld [vmem:[#allocation5 + $0x5c] sm:$0xf]
    %v461 = vld [vmem:[#allocation5 + $0x60] sm:$0xf]
    %v462 = vld [vmem:[#allocation5 + $0x64] sm:$0xf]
    %v463 = vld [vmem:[#allocation5 + $0x68] sm:$0xf]
    %v464 = vld [vmem:[#allocation5 + $0x6c] sm:$0xf]
    %v465 = vld [vmem:[#allocation5 + $0x70] sm:$0xf]
    %v466 = vld [vmem:[#allocation5 + $0x74] sm:$0xf]
    %v467 = vld [vmem:[#allocation5 + $0x78] sm:$0xf]
    %v468 = vld [vmem:[#allocation5 + $0x7c] sm:$0xf]
    %v469 = vld [vmem:[#allocation5 + $0x80] sm:$0xf]
    %v470 = vld [vmem:[#allocation5 + $0x84] sm:$0xf]
    %v471 = vld [vmem:[#allocation5 + $0x88] sm:$0xf]
    %v472 = vld [vmem:[#allocation5 + $0x8c] sm:$0xf]
    %v473 = vld [vmem:[#allocation5 + $0x90] sm:$0xf]
    %v474 = vld [vmem:[#allocation5 + $0x94] sm:$0xf]
    %v475 = vld [vmem:[#allocation5 + $0x98] sm:$0xf]
    %v476 = vld [vmem:[#allocation5 + $0x9c] sm:$0xf]
    %v477 = vld [vmem:[#allocation5 + $0xa0] sm:$0xf]
    %v478 = vld [vmem:[#allocation5 + $0xa4] sm:$0xf]
    %v479 = vld [vmem:[#allocation5 + $0xa8] sm:$0xf]
    %v480 = vld [vmem:[#allocation5 + $0xac] sm:$0xf]
    %v481 = vld [vmem:[#allocation5 + $0xb0] sm:$0xf]
    %v482 = vld [vmem:[#allocation5 + $0xb4] sm:$0xf]
    %v483 = vld [vmem:[#allocation5 + $0xb8] sm:$0xf]
    %v484 = vld [vmem:[#allocation5 + $0xbc] sm:$0xf]
    %v485 = vld [vmem:[#allocation5 + $0xc0] sm:$0xf]
    %v486 = vld [vmem:[#allocation5 + $0xc4] sm:$0xf]
    %v487 = vld [vmem:[#allocation5 + $0xc8] sm:$0xf]
    %v488 = vld [vmem:[#allocation5 + $0xcc] sm:$0xf]
    %v489 = vld [vmem:[#allocation5 + $0xd0] sm:$0xf]
    %v490 = vld [vmem:[#allocation5 + $0xd4] sm:$0xf]
    %v491 = vld [vmem:[#allocation5 + $0xd8] sm:$0xf]
    %v492 = vld [vmem:[#allocation5 + $0xdc] sm:$0xf]
    %v493 = vld [vmem:[#allocation5 + $0xe0] sm:$0xf]
    %v494 = vld [vmem:[#allocation5 + $0xe4] sm:$0xf]
    %v495 = vld [vmem:[#allocation5 + $0xe8] sm:$0xf]
    %v496 = vld [vmem:[#allocation5 + $0xec] sm:$0xf]
    %v497 = vld [vmem:[#allocation5 + $0xf0] sm:$0xf]
    %v498 = vld [vmem:[#allocation5 + $0xf4] sm:$0xf]
    %v499 = vld [vmem:[#allocation5 + $0xf8] sm:$0xf]
    %v500 = vld [vmem:[#allocation5 + $0xfc] sm:$0xf]
    %v501 = vld [vmem:[%s6] sm:$0x1]
    %v503 = vlaneseq
    %v504 = vshrl.u32 %v503, 7
    %v505 = vsub.s32 0, %v504
    %v506 = vrot.slane %v501, %v505
    %v572 = vunpack.c.l.b16 %v437
    %v573 = vunpack.c.l.b16 %v438
    %v574 = vunpack.c.l.b16 %v439
    %v575 = vunpack.c.l.b16 %v440
    %v576 = vunpack.c.l.b16 %v441
    %v577 = vunpack.c.l.b16 %v442
    %v578 = vunpack.c.l.b16 %v443
    %v579 = vunpack.c.l.b16 %v444
    %v580 = vunpack.c.l.b16 %v445
    %v581 = vunpack.c.l.b16 %v446
    %v582 = vunpack.c.l.b16 %v447
    %v583 = vunpack.c.l.b16 %v448
    %v584 = vunpack.c.l.b16 %v449
    %v585 = vunpack.c.l.b16 %v450
    %v586 = vunpack.c.l.b16 %v451
    %v587 = vunpack.c.l.b16 %v452
    %v588 = vunpack.c.l.b16 %v453
    %v589 = vunpack.c.l.b16 %v454
    %v590 = vunpack.c.l.b16 %v455
    %v591 = vunpack.c.l.b16 %v456
    %v592 = vunpack.c.l.b16 %v457
    %v593 = vunpack.c.l.b16 %v458
    %v594 = vunpack.c.l.b16 %v459
    %v595 = vunpack.c.l.b16 %v460
    %v596 = vunpack.c.l.b16 %v461
    %v597 = vunpack.c.l.b16 %v462
    %v598 = vunpack.c.l.b16 %v463
    %v599 = vunpack.c.l.b16 %v464
    %v600 = vunpack.c.l.b16 %v465
    %v601 = vunpack.c.l.b16 %v466
    %v602 = vunpack.c.l.b16 %v467
    %v603 = vunpack.c.l.b16 %v468
    %v604 = vunpack.c.l.b16 %v469
    %v605 = vunpack.c.l.b16 %v470
    %v606 = vunpack.c.l.b16 %v471
    %v607 = vunpack.c.l.b16 %v472
    %v608 = vunpack.c.l.b16 %v473
    %v609 = vunpack.c.l.b16 %v474
    %v610 = vunpack.c.l.b16 %v475
    %v611 = vunpack.c.l.b16 %v476
    %v612 = vunpack.c.l.b16 %v477
    %v613 = vunpack.c.l.b16 %v478
    %v614 = vunpack.c.l.b16 %v479
    %v615 = vunpack.c.l.b16 %v480
    %v616 = vunpack.c.l.b16 %v481
    %v617 = vunpack.c.l.b16 %v482
    %v618 = vunpack.c.l.b16 %v483
    %v619 = vunpack.c.l.b16 %v484
    %v620 = vunpack.c.l.b16 %v485
    %v621 = vunpack.c.l.b16 %v486
    %v622 = vunpack.c.l.b16 %v487
    %v623 = vunpack.c.l.b16 %v488
    %v624 = vunpack.c.l.b16 %v489
    %v625 = vunpack.c.l.b16 %v490
    %v626 = vunpack.c.l.b16 %v491
    %v627 = vunpack.c.l.b16 %v492
    %v628 = vunpack.c.l.b16 %v493
    %v629 = vunpack.c.l.b16 %v494
    %v630 = vunpack.c.l.b16 %v495
    %v631 = vunpack.c.l.b16 %v496
    %v632 = vunpack.c.l.b16 %v497
    %v633 = vunpack.c.l.b16 %v498
    %v634 = vunpack.c.l.b16 %v499
    %v635 = vunpack.c.l.b16 %v500
    %v636 = vpack.c.b16 %v573, %v572
    %v637 = vpack.c.b16 %v575, %v574
    %v638 = vpack.c.b16 %v577, %v576
    %v639 = vpack.c.b16 %v579, %v578
    %v640 = vpack.c.b16 %v581, %v580
    %v641 = vpack.c.b16 %v583, %v582
    %v642 = vpack.c.b16 %v585, %v584
    %v643 = vpack.c.b16 %v587, %v586
    %v644 = vpack.c.b16 %v589, %v588
    %v645 = vpack.c.b16 %v591, %v590
    %v646 = vpack.c.b16 %v593, %v592
    %v647 = vpack.c.b16 %v595, %v594
    %v648 = vpack.c.b16 %v597, %v596
    %v649 = vpack.c.b16 %v599, %v598
    %v650 = vpack.c.b16 %v601, %v600
    %v651 = vpack.c.b16 %v603, %v602
    %v652 = vpack.c.b16 %v605, %v604
    %v653 = vpack.c.b16 %v607, %v606
    %v654 = vpack.c.b16 %v609, %v608
    %v655 = vpack.c.b16 %v611, %v610
    %v656 = vpack.c.b16 %v613, %v612
    %v657 = vpack.c.b16 %v615, %v614
    %v658 = vpack.c.b16 %v617, %v616
    %v659 = vpack.c.b16 %v619, %v618
    %v660 = vpack.c.b16 %v621, %v620
    %v661 = vpack.c.b16 %v623, %v622
    %v662 = vpack.c.b16 %v625, %v624
    %v663 = vpack.c.b16 %v627, %v626
    %v664 = vpack.c.b16 %v629, %v628
    %v665 = vpack.c.b16 %v631, %v630
    %v666 = vpack.c.b16 %v633, %v632
    %v667 = vpack.c.b16 %v635, %v634
    %700 = vmatprep.subr.bf16.mxu0 0
    %701 = vmatpush1.bf16.msra.mxu0 %v636
    %702 = vmatprep.subr.bf16.mxu0 0
    %703 = vmatpush1.bf16.msra.mxu0 %v637
    %704 = vmatprep.subr.bf16.mxu0 0
    %705 = vmatpush1.bf16.msra.mxu0 %v638
    %706 = vmatprep.subr.bf16.mxu0 0
    %707 = vmatpush1.bf16.msra.mxu0 %v639
    %708 = vmatprep.subr.bf16.mxu0 0
    %709 = vmatpush1.bf16.msra.mxu0 %v640
    %710 = vmatprep.subr.bf16.mxu0 0
    %711 = vmatpush1.bf16.msra.mxu0 %v641
    %712 = vmatprep.subr.bf16.mxu0 0
    %713 = vmatpush1.bf16.msra.mxu0 %v642
    %714 = vmatprep.subr.bf16.mxu0 0
    %715 = vmatpush1.bf16.msra.mxu0 %v643
    %716 = vmatprep.subr.bf16.mxu0 0
    %717 = vmatpush1.bf16.msra.mxu0 %v644
    %718 = vmatprep.subr.bf16.mxu0 0
    %719 = vmatpush1.bf16.msra.mxu0 %v645
    %720 = vmatprep.subr.bf16.mxu0 0
    %721 = vmatpush1.bf16.msra.mxu0 %v646
    %722 = vmatprep.subr.bf16.mxu0 0
    %723 = vmatpush1.bf16.msra.mxu0 %v647
    %724 = vmatprep.subr.bf16.mxu0 0
    %725 = vmatpush1.bf16.msra.mxu0 %v648
    %726 = vmatprep.subr.bf16.mxu0 0
    %727 = vmatpush1.bf16.msra.mxu0 %v649
    %728 = vmatprep.subr.bf16.mxu0 0
    %729 = vmatpush1.bf16.msra.mxu0 %v650
    %730 = vmatprep.subr.bf16.mxu0 0
    %731 = vmatpush1.bf16.msra.mxu0 %v651
    %732 = vmatprep.mubr.bf16.mxu0 %v434
    %733 = vmatmul.mubr.bf16.gmra.mrb[0].mxu0 %v433
    %v734 = vpop.f32.mrb[0].mxu0
    %v735 = vadd.f32 %v506, %v734
    %v736 = vpop.f32.mrb[0].mxu0
    %v737 = vpop.f32.mrb[0].mxu0
    %v738 = vadd.f32 %v506, %v737
    %v739 = vpop.f32.mrb[0].mxu0
    %740 = vdwg.mxu0
    %741 = vmatprep.subr.bf16.mxu0 0
    %742 = vmatpush1.bf16.msra.mxu0 %v652
    %743 = vmatprep.subr.bf16.mxu0 0
    %744 = vmatpush1.bf16.msra.mxu0 %v653
    %745 = vmatprep.subr.bf16.mxu0 0
    %746 = vmatpush1.bf16.msra.mxu0 %v654
    %747 = vmatprep.subr.bf16.mxu0 0
    %748 = vmatpush1.bf16.msra.mxu0 %v655
    %749 = vmatprep.subr.bf16.mxu0 0
    %750 = vmatpush1.bf16.msra.mxu0 %v656
    %751 = vmatprep.subr.bf16.mxu0 0
    %752 = vmatpush1.bf16.msra.mxu0 %v657
    %753 = vmatprep.subr.bf16.mxu0 0
    %754 = vmatpush1.bf16.msra.mxu0 %v658
    %755 = vmatprep.subr.bf16.mxu0 0
    %756 = vmatpush1.bf16.msra.mxu0 %v659
    %757 = vmatprep.subr.bf16.mxu0 0
    %758 = vmatpush1.bf16.msra.mxu0 %v660
    %759 = vmatprep.subr.bf16.mxu0 0
    %760 = vmatpush1.bf16.msra.mxu0 %v661
    %761 = vmatprep.subr.bf16.mxu0 0
    %762 = vmatpush1.bf16.msra.mxu0 %v662
    %763 = vmatprep.subr.bf16.mxu0 0
    %764 = vmatpush1.bf16.msra.mxu0 %v663
    %765 = vmatprep.subr.bf16.mxu0 0
    %766 = vmatpush1.bf16.msra.mxu0 %v664
    %767 = vmatprep.subr.bf16.mxu0 0
    %768 = vmatpush1.bf16.msra.mxu0 %v665
    %769 = vmatprep.subr.bf16.mxu0 0
    %770 = vmatpush1.bf16.msra.mxu0 %v666
    %771 = vmatprep.subr.bf16.mxu0 0
    %772 = vmatpush1.bf16.msra.mxu0 %v667
    %773 = vmatprep.mubr.bf16.mxu0 %v436
    %774 = vmatmul.mubr.bf16.gmra.mrb[0].mxu0 %v435
    %v775 = vpop.f32.mrb[0].mxu0
    %v776 = vadd.f32 %v735, %v775
    %v777 = vpop.f32.mrb[0].mxu0
    %v778 = vpop.f32.mrb[0].mxu0
    %v779 = vadd.f32 %v738, %v778
    %v780 = vpop.f32.mrb[0].mxu0
    %781 = vdwg.mxu0
    %v782 = vld [vmem:[%s7] sm:$0x1]
    %v783 = vld [vmem:[%s8] sm:$0x1]
    %784 = vadd.xlane.f32.xlu0 %v776
    %v785 = vpop.xlane.xlu0 %784
    %786 = vadd.xlane.f32.xlu0 %v779
    %v787 = vpop.xlane.xlu0 %786
    %v788 = vmul.f32 %v785, 0.0078125
    %v789 = vmul.f32 %v787, 0.0078125
    %v790 = vmul.f32 %v776, %v776
    %v791 = vmul.f32 %v779, %v779
    %792 = vadd.xlane.f32.xlu0 %v790
    %v793 = vpop.xlane.xlu0 %792
    %794 = vadd.xlane.f32.xlu0 %v791
    %v795 = vpop.xlane.xlu0 %794
    %v796 = vmul.f32 %v793, 0.0078125
    %v797 = vmul.f32 %v795, 0.0078125
    %v798 = vmul.f32 %v788, %v788
    %v799 = vmul.f32 %v789, %v789
    %v800 = vsub.f32 %v796, %v798
    %v801 = vsub.f32 %v797, %v799
    %v802 = vmax.f32 %v800, 0.0
    %v803 = vmax.f32 %v801, 0.0
    %v804 = vadd.f32 %v802, 1e-05
    %v805 = vadd.f32 %v803, 1e-05
    %v806 = vrsqrt.pop %v804
    %v807 = vrsqrt.pop %v805
    %v808 = vsub.f32 %v776, %v788
    %v809 = vsub.f32 %v779, %v789
    %v810 = vmul.f32 %v808, %v806
    %v811 = vmul.f32 %v809, %v807
    %v813 = vlaneseq
    %v814 = vshrl.u32 %v813, 7
    %v815 = vsub.s32 0, %v814
    %v816 = vrot.slane %v782, %v815
    %v818 = vmul.f32 %v810, %v816
    %v819 = vmul.f32 %v811, %v816
    %v821 = vlaneseq
    %v822 = vshrl.u32 %v821, 7
    %v823 = vsub.s32 0, %v822
    %v824 = vrot.slane %v783, %v823
    %v826 = vadd.f32 %v818, %v824
    %v827 = vadd.f32 %v819, %v824
    %vm828 = vcmp.gt.f32.partialorder %v826, 0.0
    %vm829 = vcmp.gt.f32.partialorder %v827, 0.0
    %v830 = vmul.f32 %v826, 0.2
    %v831 = vmul.f32 %v827, 0.2
    %v832 = vsel %vm828, %v826, %v830
    %v833 = vsel %vm829, %v827, %v831
    %v834 = vpack.c.bf16 %v833, %v832
    %v835 = vld [vmem:[%s9] sm:$0xf]
    %v836 = vld [vmem:[%s9 + $0x4] sm:$0xf]
    %v837 = vld [vmem:[%s9 + $0x8] sm:$0xf]
    %v838 = vld [vmem:[%s9 + $0xc] sm:$0xf]
    %v839 = vld [vmem:[%s9 + $0x10] sm:$0xf]
    %v840 = vld [vmem:[%s9 + $0x14] sm:$0xf]
    %v841 = vld [vmem:[%s9 + $0x18] sm:$0xf]
    %v842 = vld [vmem:[%s9 + $0x1c] sm:$0xf]
    %v843 = vld [vmem:[%s9 + $0x20] sm:$0xf]
    %v844 = vld [vmem:[%s9 + $0x24] sm:$0xf]
    %v845 = vld [vmem:[%s9 + $0x28] sm:$0xf]
    %v846 = vld [vmem:[%s9 + $0x2c] sm:$0xf]
    %v847 = vld [vmem:[%s9 + $0x30] sm:$0xf]
    %v848 = vld [vmem:[%s9 + $0x34] sm:$0xf]
    %v849 = vld [vmem:[%s9 + $0x38] sm:$0xf]
    %v850 = vld [vmem:[%s9 + $0x3c] sm:$0xf]
    %v851 = vld [vmem:[%s10] sm:$0x1]
    %v853 = vlaneseq
    %v854 = vshrl.u32 %v853, 7
    %v855 = vsub.s32 0, %v854
    %v856 = vrot.slane %v851, %v855
    %v874 = vunpack.c.l.b16 %v835
    %v875 = vunpack.c.l.b16 %v836
    %v876 = vunpack.c.l.b16 %v837
    %v877 = vunpack.c.l.b16 %v838
    %v878 = vunpack.c.l.b16 %v839
    %v879 = vunpack.c.l.b16 %v840
    %v880 = vunpack.c.l.b16 %v841
    %v881 = vunpack.c.l.b16 %v842
    %v882 = vunpack.c.l.b16 %v843
    %v883 = vunpack.c.l.b16 %v844
    %v884 = vunpack.c.l.b16 %v845
    %v885 = vunpack.c.l.b16 %v846
    %v886 = vunpack.c.l.b16 %v847
    %v887 = vunpack.c.l.b16 %v848
    %v888 = vunpack.c.l.b16 %v849
    %v889 = vunpack.c.l.b16 %v850
    %v890 = vpack.c.b16 %v875, %v874
    %v891 = vpack.c.b16 %v877, %v876
    %v892 = vpack.c.b16 %v879, %v878
    %v893 = vpack.c.b16 %v881, %v880
    %v894 = vpack.c.b16 %v883, %v882
    %v895 = vpack.c.b16 %v885, %v884
    %v896 = vpack.c.b16 %v887, %v886
    %v897 = vpack.c.b16 %v889, %v888
    %906 = vmatprep.subr.bf16.mxu0 0
    %907 = vmatpush1.bf16.msra.mxu0 %v890
    %908 = vmatprep.subr.bf16.mxu0 0
    %909 = vmatpush1.bf16.msra.mxu0 %v891
    %910 = vmatprep.subr.bf16.mxu0 0
    %911 = vmatpush1.bf16.msra.mxu0 %v892
    %912 = vmatprep.subr.bf16.mxu0 0
    %913 = vmatpush1.bf16.msra.mxu0 %v893
    %914 = vmatprep.subr.bf16.mxu0 0
    %915 = vmatpush1.bf16.msra.mxu0 %v894
    %916 = vmatprep.subr.bf16.mxu0 0
    %917 = vmatpush1.bf16.msra.mxu0 %v895
    %918 = vmatprep.subr.bf16.mxu0 0
    %919 = vmatpush1.bf16.msra.mxu0 %v896
    %920 = vmatprep.subr.bf16.mxu0 0
    %921 = vmatpush1.bf16.msra.mxu0 %v897
    %922 = vmatprep.subr.bf16.mxu0 0
    %923 = vmatpush1.bf16.msra.mxu0 0
    %924 = vmatprep.subr.bf16.mxu0 0
    %925 = vmatpush1.bf16.msra.mxu0 0
    %926 = vmatprep.subr.bf16.mxu0 0
    %927 = vmatpush1.bf16.msra.mxu0 0
    %928 = vmatprep.subr.bf16.mxu0 0
    %929 = vmatpush1.bf16.msra.mxu0 0
    %930 = vmatprep.subr.bf16.mxu0 0
    %931 = vmatpush1.bf16.msra.mxu0 0
    %932 = vmatprep.subr.bf16.mxu0 0
    %933 = vmatpush1.bf16.msra.mxu0 0
    %934 = vmatprep.subr.bf16.mxu0 0
    %935 = vmatpush1.bf16.msra.mxu0 0
    %936 = vmatprep.subr.bf16.mxu0 0
    %937 = vmatpush1.bf16.msra.mxu0 0
    %938 = vmatprep.mubr.bf16.mxu0 0
    %939 = vmatmul.mubr.bf16.gmra.mrb[0].mxu0 %v834
    %v940 = vpop.f32.mrb[0].mxu0
    %v941 = vadd.f32 %v856, %v940
    %v942 = vpop.f32.mrb[0].mxu0
    %v943 = vpop.f32.mrb[0].mxu0
    %v944 = vadd.f32 %v856, %v943
    %v945 = vpop.f32.mrb[0].mxu0
    %946 = vdwg.mxu0
    %v947 = vld [vmem:[%s11] sm:$0x1]
    %v948 = vld [vmem:[%s12] sm:$0x1]
    %949 = vadd.xlane.f32.xlu0 %v941
    %v950 = vpop.xlane.xlu0 %949
    %951 = vadd.xlane.f32.xlu0 %v944
    %v952 = vpop.xlane.xlu0 %951
    %v953 = vmul.f32 %v950, 0.03125
    %v954 = vmul.f32 %v952, 0.03125
    %v955 = vmul.f32 %v941, %v941
    %v956 = vmul.f32 %v944, %v944
    %957 = vadd.xlane.f32.xlu0 %v955
    %v958 = vpop.xlane.xlu0 %957
    %959 = vadd.xlane.f32.xlu0 %v956
    %v960 = vpop.xlane.xlu0 %959
    %v961 = vmul.f32 %v958, 0.03125
    %v962 = vmul.f32 %v960, 0.03125
    %v963 = vmul.f32 %v953, %v953
    %v964 = vmul.f32 %v954, %v954
    %v965 = vsub.f32 %v961, %v963
    %v966 = vsub.f32 %v962, %v964
    %v967 = vmax.f32 %v965, 0.0
    %v968 = vmax.f32 %v966, 0.0
    %v969 = vadd.f32 %v967, 1e-05
    %v970 = vadd.f32 %v968, 1e-05
    %v971 = vrsqrt.pop %v969
    %v972 = vrsqrt.pop %v970
    %v973 = vsub.f32 %v941, %v953
    %v974 = vsub.f32 %v944, %v954
    %v975 = vmul.f32 %v973, %v971
    %v976 = vmul.f32 %v974, %v972
    %v978 = vlaneseq
    %v979 = vshrl.u32 %v978, 7
    %v980 = vsub.s32 0, %v979
    %v981 = vrot.slane %v947, %v980
    %v983 = vmul.f32 %v975, %v981
    %v984 = vmul.f32 %v976, %v981
    %v986 = vlaneseq
    %v987 = vshrl.u32 %v986, 7
    %v988 = vsub.s32 0, %v987
    %v989 = vrot.slane %v948, %v988
    %v991 = vadd.f32 %v983, %v989
    %v992 = vadd.f32 %v984, %v989
    %vm993 = vcmp.gt.f32.partialorder %v991, 0.0
    %vm994 = vcmp.gt.f32.partialorder %v992, 0.0
    %v995 = vmul.f32 %v991, 0.2
    %v996 = vmul.f32 %v992, 0.2
    %v997 = vsel %vm993, %v991, %v995
    %v998 = vsel %vm994, %v992, %v996
    %v999 = vpack.c.bf16 %v998, %v997
    %v1000 = vld [vmem:[%s13] sm:$0xf]
    %v1001 = vld [vmem:[%s13 + $0x4] sm:$0xf]
    %v1002 = vld [vmem:[%s13 + $0x8] sm:$0xf]
    %v1003 = vld [vmem:[%s13 + $0xc] sm:$0xf]
    %v1004 = vld [vmem:[%s13 + $0x10] sm:$0xf]
    %v1005 = vld [vmem:[%s13 + $0x14] sm:$0xf]
    %v1006 = vld [vmem:[%s13 + $0x18] sm:$0xf]
    %v1007 = vld [vmem:[%s13 + $0x1c] sm:$0xf]
    %v1008 = vld [vmem:[%s13 + $0x20] sm:$0xf]
    %v1009 = vld [vmem:[%s13 + $0x24] sm:$0xf]
    %v1010 = vld [vmem:[%s13 + $0x28] sm:$0xf]
    %v1011 = vld [vmem:[%s13 + $0x2c] sm:$0xf]
    %v1012 = vld [vmem:[%s13 + $0x30] sm:$0xf]
    %v1013 = vld [vmem:[%s13 + $0x34] sm:$0xf]
    %v1014 = vld [vmem:[%s13 + $0x38] sm:$0xf]
    %v1015 = vld [vmem:[%s13 + $0x3c] sm:$0xf]
    %v1016 = vld [vmem:[%s14] sm:$0x1]
    %v1018 = vlaneseq
    %v1019 = vshrl.u32 %v1018, 7
    %v1020 = vsub.s32 0, %v1019
    %v1021 = vrot.slane %v1016, %v1020
    %v1039 = vunpack.c.l.b16 %v1000
    %v1040 = vunpack.c.l.b16 %v1001
    %v1041 = vunpack.c.l.b16 %v1002
    %v1042 = vunpack.c.l.b16 %v1003
    %v1043 = vunpack.c.l.b16 %v1004
    %v1044 = vunpack.c.l.b16 %v1005
    %v1045 = vunpack.c.l.b16 %v1006
    %v1046 = vunpack.c.l.b16 %v1007
    %v1047 = vunpack.c.l.b16 %v1008
    %v1048 = vunpack.c.l.b16 %v1009
    %v1049 = vunpack.c.l.b16 %v1010
    %v1050 = vunpack.c.l.b16 %v1011
    %v1051 = vunpack.c.l.b16 %v1012
    %v1052 = vunpack.c.l.b16 %v1013
    %v1053 = vunpack.c.l.b16 %v1014
    %v1054 = vunpack.c.l.b16 %v1015
    %v1055 = vpack.c.b16 %v1040, %v1039
    %v1056 = vpack.c.b16 %v1042, %v1041
    %v1057 = vpack.c.b16 %v1044, %v1043
    %v1058 = vpack.c.b16 %v1046, %v1045
    %v1059 = vpack.c.b16 %v1048, %v1047
    %v1060 = vpack.c.b16 %v1050, %v1049
    %v1061 = vpack.c.b16 %v1052, %v1051
    %v1062 = vpack.c.b16 %v1054, %v1053
    %1071 = vmatprep.subr.bf16.mxu0 0
    %1072 = vmatpush1.bf16.msra.mxu0 %v1055
    %1073 = vmatprep.subr.bf16.mxu0 0
    %1074 = vmatpush1.bf16.msra.mxu0 %v1056
    %1075 = vmatprep.subr.bf16.mxu0 0
    %1076 = vmatpush1.bf16.msra.mxu0 %v1057
    %1077 = vmatprep.subr.bf16.mxu0 0
    %1078 = vmatpush1.bf16.msra.mxu0 %v1058
    %1079 = vmatprep.subr.bf16.mxu0 0
    %1080 = vmatpush1.bf16.msra.mxu0 %v1059
    %1081 = vmatprep.subr.bf16.mxu0 0
    %1082 = vmatpush1.bf16.msra.mxu0 %v1060
    %1083 = vmatprep.subr.bf16.mxu0 0
    %1084 = vmatpush1.bf16.msra.mxu0 %v1061
    %1085 = vmatprep.subr.bf16.mxu0 0
    %1086 = vmatpush1.bf16.msra.mxu0 %v1062
    %1087 = vmatprep.subr.bf16.mxu0 0
    %1088 = vmatpush1.bf16.msra.mxu0 0
    %1089 = vmatprep.subr.bf16.mxu0 0
    %1090 = vmatpush1.bf16.msra.mxu0 0
    %1091 = vmatprep.subr.bf16.mxu0 0
    %1092 = vmatpush1.bf16.msra.mxu0 0
    %1093 = vmatprep.subr.bf16.mxu0 0
    %1094 = vmatpush1.bf16.msra.mxu0 0
    %1095 = vmatprep.subr.bf16.mxu0 0
    %1096 = vmatpush1.bf16.msra.mxu0 0
    %1097 = vmatprep.subr.bf16.mxu0 0
    %1098 = vmatpush1.bf16.msra.mxu0 0
    %1099 = vmatprep.subr.bf16.mxu0 0
    %1100 = vmatpush1.bf16.msra.mxu0 0
    %1101 = vmatprep.subr.bf16.mxu0 0
    %1102 = vmatpush1.bf16.msra.mxu0 0
    %1103 = vmatprep.mubr.bf16.mxu0 0
    %1104 = vmatmul.mubr.bf16.gmra.mrb[0].mxu0 %v999
    %v1105 = vpop.f32.mrb[0].mxu0
    %v1106 = vadd.f32 %v1021, %v1105
    %v1107 = vpop.f32.mrb[0].mxu0
    %v1108 = vpop.f32.mrb[0].mxu0
    %v1109 = vadd.f32 %v1021, %v1108
    %v1110 = vpop.f32.mrb[0].mxu0
    %1111 = vdwg.mxu0
    %1112 = vst.msk [vmem:[#allocation7] sm:$0xff] %vm201, %v1106
    %1113 = vst.msk [vmem:[#allocation7 + $0x8] sm:$0xff] %vm201, %v1109
    // Predicated region
    $region70: #{tpu_custom_call.1} parent=1 // pred_check
      _
    $region71: #{tpu_custom_call.1} parent=1 // pred_check_branch
      %1115 = sbr.rel (0) target = $region73
    $region72: #{tpu_custom_call.1} parent=1 // pred_region
      %s1117 = ssub.s32 256, 256
      %1118 = vsyncadd [#allocation4], %s1117
      %s1119 = sshll.u32 [#allocation7], 4
      %s1120 = int_to_ptr.vmem [resolvable:$true] %s1119
      %1125 = dma.vmem_to_hbm [thread:$0]  %s1120, 256, %s15, [#allocation4], 128, 128, 8
    $region73: #{tpu_custom_call.1} parent=1 // pred_fallthru
      _
    // Predicated region
    $region74: #{tpu_custom_call.1} parent=1 // pred_check
      _
    $region75: #{tpu_custom_call.1} parent=1 // pred_check_branch
      %1127 = sbr.rel (0) target = $region77
    $region76: #{tpu_custom_call.1} parent=1 // pred_region
      %1128 = dma.done [#allocation4], 256
    $region77: #{tpu_custom_call.1} parent=1 // pred_fallthru
      _
    %1129 = vsyncpa [#allocation3], 1
    %1130 = vsyncpa [#allocation6], 1
    %1131 = vsyncpa [#allocation4], 1

</llo_original>
